<compile_context>
chip_gen: v7x
topology: tpu7x:2x2x1
jax: 0.10.0
libtpu: 0.0.40
codegen_flags: <defaults>
</compile_context>

<pallas_src>
import functools
import math

import jax
import jax.numpy as jnp
import numpy as np
from jax import lax
from jax.experimental import pallas as pl
from jax.experimental.pallas import tpu as pltpu


def _round_up(x, m):
    return ((x + m - 1) // m) * m


def _subsample_block_kernel(x_ref, w_ref, b_ref, g_ref, be_ref, o_ref, *,
                            kernel_size, stride, t_tile, eps):
    """One (batch b, time-tile j) grid step.

    x_ref  : [1, stride, 1, F*C_i, t_tile + halo]  phase-split padded input window
    w_ref  : [F*C_o, K*F*C_i]                      block-diagonal grouped-conv weight
    b_ref  : [F*C_o, 1]                            conv bias            (f32)
    g_ref  : [F*C_o, 1]                            LayerNorm gamma flat (f32)
    be_ref : [F*C_o, 1]                            LayerNorm beta  flat (f32)
    o_ref  : [1, F*C_o, t_tile]                    output tile (time on lanes)
    """
    # Tap k of output t reads padded-time index t*stride + k, i.e. phase
    # k % stride at position t + k // stride -> a *static* contiguous lane slice
    # of the phase-split window (no dynamic lane offsets, no HBM im2col).
    taps = [
        x_ref[0, k % stride, 0, :, pl.ds(k // stride, t_tile)]
        for k in range(kernel_size)
    ]
    xg = jnp.concatenate(taps, axis=0)                 # [K*F*C_i, t_tile]

    # Grouped conv folded into a single MXU matmul (block-diagonal weight,
    # contraction dim = K*F*C_i), f32 accumulation.
    y = jnp.dot(w_ref[...], xg, preferred_element_type=jnp.float32)

    # bias + ReLU (nn.Dropout is the identity at inference), all in f32.
    y = jnp.maximum(y + b_ref[...], 0.0)

    # LayerNorm over all conv channels (== over (C_o, F)) per (b, t):
    # reduce over sublanes, keep time on lanes; rsqrt goes to the EUP.
    # eps = 1e-12 matches PyTorch; it is below f32 resolution for typical
    # variances (kept only for semantic parity).
    mu = jnp.mean(y, axis=0, keepdims=True)
    var = jnp.mean(jnp.square(y - mu), axis=0, keepdims=True)
    y = (y - mu) * lax.rsqrt(var + eps)
    y = y * g_ref[...] + be_ref[...]

    o_ref[0] = y.astype(o_ref.dtype)


def subsample_block_forward(xs, xlens, w, b, gamma, beta, *, stride,
                            layer_norm_eps=1e-12, compute_dtype=jnp.bfloat16,
                            t_tile_max=512):
    """xs: [B, C_i, T, F] -> ([B, C_o, T_out, F], xlens_out).

    compute_dtype: MXU operand dtype (bf16 default; accumulation is always f32).
    t_tile_max: lane tile for the output time axis (512 fits comfortably on
                v5e/v6e/v7x with the small channel counts of this block).
    """
    B, C_in, T, F = xs.shape
    O_total, C_in_w, K = w.shape
    assert C_in_w == C_in and O_total % F == 0
    C_out = O_total // F
    assert gamma.shape == (C_out, F) and beta.shape == (C_out, F)
    pad = (K - 1) // 2
    T_out = (T + 2 * pad - K) // stride + 1

    # ---- time tiling: lane-dense tiles (>=128, multiple of 128) ----
    t_tile = min(t_tile_max, _round_up(T_out, 128))
    T_out_p = _round_up(T_out, t_tile)
    n_t = T_out_p // t_tile
    halo = (K - 1) // stride            # extra phase positions needed by the last taps
    U = T_out_p + halo                  # per-phase length

    # ---- glue (1x traffic): torch transpose/view channel order, zero-pad time,
    #      de-interleave into `stride` phases, then cut per-tile windows
    #      (only +halo/t_tile overlap; no K-way im2col in HBM) ----
    CF = C_in * F
    x_flat = jnp.transpose(xs, (0, 1, 3, 2)).reshape(B, CF, T)   # conv group = channel // C_in
    x_flat = x_flat.astype(compute_dtype)
    pad_right = U * stride - (T + pad)
    x_pad = jnp.pad(x_flat, ((0, 0), (0, 0), (pad, max(pad_right, 0))))
    x_pad = x_pad[:, :, :U * stride]                              # [B, CF, U*stride]
    x_ph = jnp.transpose(x_pad.reshape(B, CF, U, stride), (0, 3, 1, 2))   # [B, stride, CF, U]
    x_win = jnp.stack(
        [x_ph[:, :, :, j * t_tile: j * t_tile + t_tile + halo] for j in range(n_t)],
        axis=2)                                                   # [B, stride, n_t, CF, t_tile+halo]

    # ---- block-diagonal grouped-conv weight: one [F*C_o, K*F*C_i] matmul per
    #      tile replaces F tiny per-group dots and folds (C_i, K) into the
    #      contraction ----
    w_g = w.reshape(F, C_out, C_in, K)                            # [g, o, c, k]
    w_bd = jnp.einsum('gock,gh->gokhc', w_g, jnp.eye(F, dtype=w.dtype))
    w_bd = w_bd.reshape(F * C_out, K * CF).astype(compute_dtype)

    # Conv channel n = g*C_out + o (groups == F).  torch's .view(B, C_out, F, -1)
    # is a pure flat reinterpretation of that channel axis, so the LayerNorm
    # affine params apply by flat channel index: gamma.reshape(-1)[n].
    b_col = b.reshape(F * C_out, 1).astype(jnp.float32)
    g_col = gamma.reshape(F * C_out, 1).astype(jnp.float32)
    be_col = beta.reshape(F * C_out, 1).astype(jnp.float32)

    kernel = functools.partial(_subsample_block_kernel, kernel_size=K,
                               stride=stride, t_tile=t_tile, eps=layer_norm_eps)

    # VMEM budget: double-buffered input window + resident params + output block
    # + in-kernel working set, with generous margin (capped so v7x's 64 MiB
    # physical VMEM is never over-asked).
    bpe = np.dtype(compute_dtype).itemsize
    est = (2 * stride * CF * _round_up(t_tile + halo, 128) * bpe
           + 2 * F * C_out * _round_up(K * CF, 128) * bpe
           + 2 * F * C_out * t_tile * 4
           + (K * CF * bpe + 8 * F * C_out * 4) * t_tile)
    vmem_limit = int(min(max(4 * est + (8 << 20), 16 << 20), 40 << 20))

    y = pl.pallas_call(
        kernel,
        out_shape=jax.ShapeDtypeStruct((B, F * C_out, T_out_p), xs.dtype),
        grid=(B, n_t),
        in_specs=[
            pl.BlockSpec((1, stride, 1, CF, t_tile + halo),
                         lambda bb, j: (bb, 0, j, 0, 0)),
            pl.BlockSpec((F * C_out, K * CF), lambda bb, j: (0, 0)),   # resident
            pl.BlockSpec((F * C_out, 1), lambda bb, j: (0, 0)),        # resident
            pl.BlockSpec((F * C_out, 1), lambda bb, j: (0, 0)),        # resident
            pl.BlockSpec((F * C_out, 1), lambda bb, j: (0, 0)),        # resident
        ],
        out_specs=pl.BlockSpec((1, F * C_out, t_tile), lambda bb, j: (bb, 0, j)),
        compiler_params=pltpu.CompilerParams(
            dimension_semantics=("parallel", "parallel"),
            vmem_limit_bytes=vmem_limit),
    )(x_win, w_bd, b_col, g_col, be_col)

    # torch: .view(B, C_out, F, -1).transpose(3, 2)  -- cheap XLA layout plumbing,
    # kept outside the kernel so the kernel's stores stay lane-dense on time.
    y = y[:, :, :T_out].reshape(B, C_out, F, T_out)
    y = jnp.transpose(y, (0, 1, 3, 2))                            # [B, C_out, T_out, F]

    xlens_out = (xlens + 2 * pad - K) // stride + 1               # update_lens_1d
    return y, xlens_out


def _reference(xs, xlens, w, b, gamma, beta, *, stride, eps):
    """Plain-JAX replica of the PyTorch forward, for verification."""
    B, C_i, T, F = xs.shape
    O, _, K = w.shape
    C_out = O // F
    pad = (K - 1) // 2
    xt = jnp.transpose(xs, (0, 1, 3, 2)).reshape(B, C_i * F, T)
    y = lax.conv_general_dilated(
        xt, w, window_strides=(stride,), padding=[(pad, pad)],
        dimension_numbers=('NCH', 'OIH', 'NCH'), feature_group_count=F,
        precision=lax.Precision.HIGHEST)
    y = jnp.maximum(y + b[None, :, None], 0.0)
    T_out = y.shape[-1]
    y = jnp.transpose(y.reshape(B, C_out, F, T_out), (0, 1, 3, 2))  # [B, C_out, T_out, F]
    z = jnp.transpose(y, (0, 2, 1, 3))                              # [B, T_out, C_out, F]
    mu = jnp.mean(z, axis=(2, 3), keepdims=True)
    var = jnp.mean((z - mu) ** 2, axis=(2, 3), keepdims=True)
    z = (z - mu) / jnp.sqrt(var + eps) * gamma[None, None] + beta[None, None]
    y = jnp.transpose(z, (0, 2, 1, 3))
    xlens_out = (xlens + 2 * pad - K) // stride + 1
    return y, xlens_out


if __name__ == "__main__":
    # SubsampelBlock(in_channel=4, out_channel=4, kernel_size=3, stride=2,
    #                in_freq=8, dropout=0.0)
    B, C_in, C_out, T, F = 2, 4, 4, 16, 8
    K, stride = 3, 2
    eps = 1e-12

    key = jax.random.PRNGKey(0)
    k_x, k_w, k_b, k_g, k_be = jax.random.split(key, 5)

    xs = jax.random.normal(k_x, (B, C_in, T, F), jnp.float32)
    xlens = jnp.array([T, T - 4], jnp.int32)

    # Conv1d(in=F*C_in, out=F*C_out, K, stride, padding=(K-1)//2, groups=F) params
    fan_in = C_in * K
    bound = 1.0 / math.sqrt(fan_in)
    w = jax.random.uniform(k_w, (F * C_out, C_in, K), jnp.float32, -bound, bound)
    b = jax.random.uniform(k_b, (F * C_out,), jnp.float32, -bound, bound)
    # LayerNorm2D([C_out, F]) affine params (perturbed from identity so they are exercised)
    gamma = 1.0 + 0.1 * jax.random.normal(k_g, (C_out, F), jnp.float32)
    beta = 0.1 * jax.random.normal(k_be, (C_out, F), jnp.float32)

    y_ref, ylens_ref = _reference(xs, xlens, w, b, gamma, beta, stride=stride, eps=eps)

    # --- default bf16 MXU-operand path (halves HBM/VMEM traffic of the input) ---
    fwd_bf16 = jax.jit(functools.partial(
        subsample_block_forward, stride=stride, layer_norm_eps=eps,
        compute_dtype=jnp.bfloat16))
    y16, ylens16 = fwd_bf16(xs, xlens, w, b, gamma, beta)
    y16 = jax.block_until_ready(y16)
    # tolerance bounded by bf16 operand rounding of the MXU inputs
    np.testing.assert_allclose(np.asarray(y16), np.asarray(y_ref), rtol=5e-2, atol=5e-2)
    np.testing.assert_array_equal(np.asarray(ylens16), np.asarray(ylens_ref))

    # --- f32-operand path, tighter check (TPU MXU may still round operands to
    #     bf16 at default matmul precision, hence 2e-2 rather than 1e-5) ---
    fwd_f32 = jax.jit(functools.partial(
        subsample_block_forward, stride=stride, layer_norm_eps=eps,
        compute_dtype=jnp.float32))
    y32, ylens32 = fwd_f32(xs, xlens, w, b, gamma, beta)
    y32 = jax.block_until_ready(y32)
    np.testing.assert_allclose(np.asarray(y32), np.asarray(y_ref), rtol=2e-2, atol=2e-2)
    np.testing.assert_array_equal(np.asarray(ylens32), np.asarray(ylens_ref))

    print("KERNEL_OK")
</pallas_src>

<mosaic_0001>
module attributes {stable_mosaic.version = 11 : i64} {
  func.func @_subsample_block_kernel(%arg0: i32, %arg1: i32, %arg2: memref<1x2x1x32x129xbf16, #tpu.memory_space<vmem>>, %arg3: memref<32x96xbf16, #tpu.memory_space<vmem>>, %arg4: memref<32x1xf32, #tpu.memory_space<vmem>>, %arg5: memref<32x1xf32, #tpu.memory_space<vmem>>, %arg6: memref<32x1xf32, #tpu.memory_space<vmem>>, %arg7: memref<1x32x128xf32, #tpu.memory_space<vmem>>) attributes {dimension_semantics = [#tpu.dimension_semantics<parallel>, #tpu.dimension_semantics<parallel>], iteration_bounds = array<i64: 2, 1>, scalar_prefetch = 0 : i64, scratch_operands = 0 : i64, tpu.core_type = #tpu.core_type<tc>, window_params = [{transform_indices = @transform_0, window_bounds = array<i64: 1, 2, 1, 32, 129>}, {pipeline_mode = #tpu.pipeline_mode<synchronous>, transform_indices = @transform_1, window_bounds = array<i64: 32, 96>}, {pipeline_mode = #tpu.pipeline_mode<synchronous>, transform_indices = @transform_2, window_bounds = array<i64: 32, 1>}, {pipeline_mode = #tpu.pipeline_mode<synchronous>, transform_indices = @transform_3, window_bounds = array<i64: 32, 1>}, {pipeline_mode = #tpu.pipeline_mode<synchronous>, transform_indices = @transform_4, window_bounds = array<i64: 32, 1>}, {transform_indices = @transform_5, window_bounds = array<i64: 1, 32, 128>}]} {
    %c0 = arith.constant 0 : index
    %c0_0 = arith.constant 0 : index
    %c0_1 = arith.constant 0 : index
    %c0_2 = arith.constant 0 : index
    %c0_3 = arith.constant 0 : index
    %0 = vector.load %arg2[%c0, %c0_0, %c0_1, %c0_2, %c0_3] : memref<1x2x1x32x129xbf16, #tpu.memory_space<vmem>>, vector<1x1x1x32x128xbf16>
    %1 = vector.shape_cast %0 : vector<1x1x1x32x128xbf16> to vector<32x128xbf16>
    %c0_4 = arith.constant 0 : index
    %c1 = arith.constant 1 : index
    %c0_5 = arith.constant 0 : index
    %c0_6 = arith.constant 0 : index
    %c0_7 = arith.constant 0 : index
    %2 = vector.load %arg2[%c0_4, %c1, %c0_5, %c0_6, %c0_7] : memref<1x2x1x32x129xbf16, #tpu.memory_space<vmem>>, vector<1x1x1x32x128xbf16>
    %3 = vector.shape_cast %2 : vector<1x1x1x32x128xbf16> to vector<32x128xbf16>
    %c0_8 = arith.constant 0 : index
    %c0_9 = arith.constant 0 : index
    %c0_10 = arith.constant 0 : index
    %c0_11 = arith.constant 0 : index
    %c1_12 = arith.constant 1 : index
    %4 = vector.load %arg2[%c0_8, %c0_9, %c0_10, %c0_11, %c1_12] : memref<1x2x1x32x129xbf16, #tpu.memory_space<vmem>>, vector<1x1x1x32x128xbf16>
    %5 = vector.shape_cast %4 : vector<1x1x1x32x128xbf16> to vector<32x128xbf16>
    %6 = tpu.concatenate %1, %3, %5 in 0 : vector<32x128xbf16>, vector<32x128xbf16>, vector<32x128xbf16> -> vector<96x128xbf16>
    %c0_13 = arith.constant 0 : index
    %c0_14 = arith.constant 0 : index
    %7 = vector.load %arg3[%c0_13, %c0_14] : memref<32x96xbf16, #tpu.memory_space<vmem>>, vector<32x96xbf16>
    %cst = arith.constant dense<0.000000e+00> : vector<32x128xf32>
    %8 = tpu.matmul %7, %6, %cst {dimension_numbers = #tpu.dot_dimension_numbers<[1], [0], [0], [1], [0, 0, 1, 1], [], []>} : vector<32x96xbf16>, vector<96x128xbf16>, vector<32x128xf32> -> vector<32x128xf32>
    %c0_15 = arith.constant 0 : index
    %c0_16 = arith.constant 0 : index
    %9 = vector.load %arg4[%c0_15, %c0_16] : memref<32x1xf32, #tpu.memory_space<vmem>>, vector<32x1xf32>
    %10 = vector.broadcast %9 : vector<32x1xf32> to vector<32x128xf32>
    %11 = arith.addf %8, %10 : vector<32x128xf32>
    %cst_17 = arith.constant 0.000000e+00 : f32
    %12 = vector.broadcast %cst_17 : f32 to vector<32x128xf32>
    %13 = arith.maximumf %11, %12 : vector<32x128xf32>
    %cst_18 = arith.constant dense<0.000000e+00> : vector<128xf32>
    %14 = vector.multi_reduction <add>, %13, %cst_18 [0] : vector<32x128xf32> to vector<128xf32>
    %15 = vector.shape_cast %14 : vector<128xf32> to vector<1x128xf32>
    %cst_19 = arith.constant 3.200000e+01 : f32
    %16 = vector.broadcast %cst_19 : f32 to vector<1x128xf32>
    %17 = arith.divf %15, %16 : vector<1x128xf32>
    %18 = vector.broadcast %17 : vector<1x128xf32> to vector<32x128xf32>
    %19 = arith.subf %13, %18 : vector<32x128xf32>
    %20 = arith.mulf %19, %19 : vector<32x128xf32>
    %cst_20 = arith.constant dense<0.000000e+00> : vector<128xf32>
    %21 = vector.multi_reduction <add>, %20, %cst_20 [0] : vector<32x128xf32> to vector<128xf32>
    %22 = vector.shape_cast %21 : vector<128xf32> to vector<1x128xf32>
    %cst_21 = arith.constant 3.200000e+01 : f32
    %23 = vector.broadcast %cst_21 : f32 to vector<1x128xf32>
    %24 = arith.divf %22, %23 : vector<1x128xf32>
    %25 = vector.broadcast %17 : vector<1x128xf32> to vector<32x128xf32>
    %26 = arith.subf %13, %25 : vector<32x128xf32>
    %cst_22 = arith.constant 9.99999996E-13 : f32
    %27 = vector.broadcast %cst_22 : f32 to vector<1x128xf32>
    %28 = arith.addf %24, %27 : vector<1x128xf32>
    %29 = math.rsqrt %28 : vector<1x128xf32>
    %30 = vector.broadcast %29 : vector<1x128xf32> to vector<32x128xf32>
    %31 = arith.mulf %26, %30 : vector<32x128xf32>
    %c0_23 = arith.constant 0 : index
    %c0_24 = arith.constant 0 : index
    %32 = vector.load %arg5[%c0_23, %c0_24] : memref<32x1xf32, #tpu.memory_space<vmem>>, vector<32x1xf32>
    %33 = vector.broadcast %32 : vector<32x1xf32> to vector<32x128xf32>
    %34 = arith.mulf %31, %33 : vector<32x128xf32>
    %c0_25 = arith.constant 0 : index
    %c0_26 = arith.constant 0 : index
    %35 = vector.load %arg6[%c0_25, %c0_26] : memref<32x1xf32, #tpu.memory_space<vmem>>, vector<32x1xf32>
    %36 = vector.broadcast %35 : vector<32x1xf32> to vector<32x128xf32>
    %37 = arith.addf %34, %36 : vector<32x128xf32>
    %c0_27 = arith.constant 0 : index
    %c0_28 = arith.constant 0 : index
    %c0_29 = arith.constant 0 : index
    %38 = vector.load %arg7[%c0_27, %c0_28, %c0_29] : memref<1x32x128xf32, #tpu.memory_space<vmem>>, vector<1x32x128xf32>
    %39 = vector.shape_cast %38 : vector<1x32x128xf32> to vector<32x128xf32>
    %40 = vector.shape_cast %37 : vector<32x128xf32> to vector<1x32x128xf32>
    tpu.vector_store %arg7[%c0_27, %c0_28, %c0_29], %40 {strides = array<i32>} : memref<1x32x128xf32, #tpu.memory_space<vmem>>, vector<1x32x128xf32>,
    return
  }
  func.func @transform_0(%arg0: i32, %arg1: i32) -> (i32, i32, i32, i32, i32) {
    %c0_i32 = arith.constant 0 : i32
    %c0_i32_0 = arith.constant 0 : i32
    %c0_i32_1 = arith.constant 0 : i32
    %c0_i32_2 = arith.constant 0 : i32
    return %arg0, %c0_i32, %arg1, %c0_i32_0, %c0_i32_1 : i32, i32, i32, i32, i32
  }
  func.func @transform_1(%arg0: i32, %arg1: i32) -> (i32, i32) {
    %c0_i32 = arith.constant 0 : i32
    %c0_i32_0 = arith.constant 0 : i32
    %c0_i32_1 = arith.constant 0 : i32
    return %c0_i32, %c0_i32_0 : i32, i32
  }
  func.func @transform_2(%arg0: i32, %arg1: i32) -> (i32, i32) {
    %c0_i32 = arith.constant 0 : i32
    %c0_i32_0 = arith.constant 0 : i32
    %c0_i32_1 = arith.constant 0 : i32
    return %c0_i32, %c0_i32_0 : i32, i32
  }
  func.func @transform_3(%arg0: i32, %arg1: i32) -> (i32, i32) {
    %c0_i32 = arith.constant 0 : i32
    %c0_i32_0 = arith.constant 0 : i32
    %c0_i32_1 = arith.constant 0 : i32
    return %c0_i32, %c0_i32_0 : i32, i32
  }
  func.func @transform_4(%arg0: i32, %arg1: i32) -> (i32, i32) {
    %c0_i32 = arith.constant 0 : i32
    %c0_i32_0 = arith.constant 0 : i32
    %c0_i32_1 = arith.constant 0 : i32
    return %c0_i32, %c0_i32_0 : i32, i32
  }
  func.func @transform_5(%arg0: i32, %arg1: i32) -> (i32, i32, i32) {
    %c0_i32 = arith.constant 0 : i32
    %c0_i32_0 = arith.constant 0 : i32
    return %arg0, %c0_i32, %arg1 : i32, i32, i32
  }
}

</mosaic_0001>

<llo_original>
// kernel: subsample_block_forward.1
$region0: #{subsample_block_forward.1}
  #allocation0 [shape = 'u32[]', space=smem, size = 0x4, offset = 0x4, fixed_abs, tag = 'smem constant byte address 0x4 - core index']
  #allocation1 [shape = 'u32[144,128]{1,0:T(1,128)}', space=vmem, size = 0x12000, scoped, tag = 'internal scratch']
  %s0 = inlined_call_operand.vmem [shape: bf16[2,2,1,32,129], index: 0, kind: input, shape index: {}]
  %s1 = inlined_call_operand.vmem [shape: bf16[32,96], index: 1, kind: input, shape index: {}]
  %s2 = inlined_call_operand.vmem [shape: f32[32,1], index: 2, kind: input, shape index: {}]
  %s3 = inlined_call_operand.vmem [shape: f32[32,1], index: 3, kind: input, shape index: {}]
  %s4 = inlined_call_operand.vmem [shape: f32[32,1], index: 4, kind: input, shape index: {}]
  %s5 = inlined_call_operand.vmem [shape: f32[2,32,128], index: 5, kind: output, shape index: {}]
  %s6 = sld [smem:[#allocation0]]
  $region53: #{subsample_block_forward.1} parent=0
    _
  %s8 = ssub.s32 1, %s6
  %s9 = scalar_select 0, %s8, %s6
  loop: start=0, step=1, limit=4
  $region2: #{subsample_block_forward.1} parent=0 // loop_pre_header
    _
  $region3: #{subsample_block_forward.1} parent=0 // loop_header
    %s11 = sphi 0, %s15
    %p12 = scmp.ge.s32.totalorder %s11, 4
    %s18 = sphi 0, %s30
    %s19 = sphi 0, %s26
    %s20 = sphi 0, %s18
    %s21 = sphi 0, %s19
    %s22 = sphi 0, %s20
    %s23 = sphi 0, %s21
    %s35 = sphi 0, %s37
    %s38 = sphi 0, %s35
    %s39 = sphi 0, %s38
    %s55 = sphi 0, %s39
    %s59 = sphi 0, %s59
    %s61 = sphi 0, %s59
    %s62 = sphi 0, %s61
    %s76 = sphi 0, %s62
    %s80 = sphi 0, %s80
    %s82 = sphi 0, %s80
    %s83 = sphi 0, %s82
    %s97 = sphi 0, %s83
    %s101 = sphi 0, %s101
    %s103 = sphi 0, %s101
    %s104 = sphi 0, %s103
    %s118 = sphi 0, %s104
    %s122 = sphi 0, %s122
    %s124 = sphi 0, %s122
    %s125 = sphi 0, %s124
    %s139 = sphi 0, %s125
    %s147 = sphi 0, %s149
    %s150 = sphi 0, %s147
    %s151 = sphi 0, %s150
    %s167 = sphi 0, %s151
  $region4: #{subsample_block_forward.1} parent=0 // loop_header_branch
    %14 = sbr.rel (%p12) target = $region8
  $region5: #{subsample_block_forward.1} parent=0 // loop_body
    %s16 = ssub.s32 %s11, 1
    %s17 = ssub.s32 %s11, 2
    %s24 = sadd.s32 1, %s19
    %p25 = scmp.ge.s32.totalorder %s24, 1
    %s26 = scalar_select %p25, 0, %s24
    %s27 = sadd.s32 1, %s18
    %s28 = scalar_select %p25, %s27, %s18
    %p29 = scmp.ge.s32.totalorder %s28, 2
    %s30 = scalar_select %p29, 0, %s28
    %s31 = ssub.s32 %s18, %s30
    %s32 = ssub.s32 %s19, %s26
    %s33 = sor.u32 %s31, %s32
    %p34 = scmp.eq.s32.totalorder %s33, 0
    %s36 = sadd.s32 %s35, 1
    %s37 = scalar_select %p34, %s35, %s36
    %p40 = pneg %p34
    %p41 = scmp.eq.s32.totalorder %s11, 1
    %p42 = por %p40, %p41
    %p43 = scmp.ne.s32.totalorder %s35, %s38
    %p44 = scmp.eq.s32.totalorder %s11, 0
    %p45 = por %p43, %p44
    %p46 = scmp.ne.s32.totalorder %s35, %s38
    %p47 = scmp.eq.s32.totalorder %s16, 1
    %p48 = por %p46, %p47
    %p49 = scmp.ne.s32.totalorder %s38, %s39
    %p50 = scmp.eq.s32.totalorder %s16, 0
    %p51 = por %p49, %p50
    %p52 = scmp.ne.s32.totalorder %s38, %s39
    %p53 = scmp.eq.s32.totalorder %s17, 1
    %p54 = por %p52, %p53
    %p56 = scmp.ne.s32.totalorder %s39, %s55
    %p57 = scmp.eq.s32.totalorder %s17, 0
    %p58 = por %p56, %p57
    %s60 = sadd.s32 %s59, 1
    %p63 = scmp.eq.s32.totalorder %s11, 1
    %p64 = scmp.ne.s32.totalorder %s59, %s61
    %p65 = scmp.eq.s32.totalorder %s11, 0
    %p66 = por %p64, %p65
    %p67 = scmp.ne.s32.totalorder %s59, %s61
    %p68 = scmp.eq.s32.totalorder %s16, 1
    %p69 = por %p67, %p68
    %p70 = scmp.ne.s32.totalorder %s61, %s62
    %p71 = scmp.eq.s32.totalorder %s16, 0
    %p72 = por %p70, %p71
    %p73 = scmp.ne.s32.totalorder %s61, %s62
    %p74 = scmp.eq.s32.totalorder %s17, 1
    %p75 = por %p73, %p74
    %p77 = scmp.ne.s32.totalorder %s62, %s76
    %p78 = scmp.eq.s32.totalorder %s17, 0
    %p79 = por %p77, %p78
    %s81 = sadd.s32 %s80, 1
    %p84 = scmp.eq.s32.totalorder %s11, 1
    %p85 = scmp.ne.s32.totalorder %s80, %s82
    %p86 = scmp.eq.s32.totalorder %s11, 0
    %p87 = por %p85, %p86
    %p88 = scmp.ne.s32.totalorder %s80, %s82
    %p89 = scmp.eq.s32.totalorder %s16, 1
    %p90 = por %p88, %p89
    %p91 = scmp.ne.s32.totalorder %s82, %s83
    %p92 = scmp.eq.s32.totalorder %s16, 0
    %p93 = por %p91, %p92
    %p94 = scmp.ne.s32.totalorder %s82, %s83
    %p95 = scmp.eq.s32.totalorder %s17, 1
    %p96 = por %p94, %p95
    %p98 = scmp.ne.s32.totalorder %s83, %s97
    %p99 = scmp.eq.s32.totalorder %s17, 0
    %p100 = por %p98, %p99
    %s102 = sadd.s32 %s101, 1
    %p105 = scmp.eq.s32.totalorder %s11, 1
    %p106 = scmp.ne.s32.totalorder %s101, %s103
    %p107 = scmp.eq.s32.totalorder %s11, 0
    %p108 = por %p106, %p107
    %p109 = scmp.ne.s32.totalorder %s101, %s103
    %p110 = scmp.eq.s32.totalorder %s16, 1
    %p111 = por %p109, %p110
    %p112 = scmp.ne.s32.totalorder %s103, %s104
    %p113 = scmp.eq.s32.totalorder %s16, 0
    %p114 = por %p112, %p113
    %p115 = scmp.ne.s32.totalorder %s103, %s104
    %p116 = scmp.eq.s32.totalorder %s17, 1
    %p117 = por %p115, %p116
    %p119 = scmp.ne.s32.totalorder %s104, %s118
    %p120 = scmp.eq.s32.totalorder %s17, 0
    %p121 = por %p119, %p120
    %s123 = sadd.s32 %s122, 1
    %p126 = scmp.eq.s32.totalorder %s11, 1
    %p127 = scmp.ne.s32.totalorder %s122, %s124
    %p128 = scmp.eq.s32.totalorder %s11, 0
    %p129 = por %p127, %p128
    %p130 = scmp.ne.s32.totalorder %s122, %s124
    %p131 = scmp.eq.s32.totalorder %s16, 1
    %p132 = por %p130, %p131
    %p133 = scmp.ne.s32.totalorder %s124, %s125
    %p134 = scmp.eq.s32.totalorder %s16, 0
    %p135 = por %p133, %p134
    %p136 = scmp.ne.s32.totalorder %s124, %s125
    %p137 = scmp.eq.s32.totalorder %s17, 1
    %p138 = por %p136, %p137
    %p140 = scmp.ne.s32.totalorder %s125, %s139
    %p141 = scmp.eq.s32.totalorder %s17, 0
    %p142 = por %p140, %p141
    %s143 = ssub.s32 %s18, %s30
    %s144 = ssub.s32 %s19, %s26
    %s145 = sor.u32 %s143, %s144
    %p146 = scmp.eq.s32.totalorder %s145, 0
    %s148 = sadd.s32 %s147, 1
    %s149 = scalar_select %p146, %s147, %s148
    %p152 = pneg %p146
    %p153 = scmp.eq.s32.totalorder %s11, 1
    %p154 = por %p152, %p153
    %p155 = scmp.ne.s32.totalorder %s147, %s150
    %p156 = scmp.eq.s32.totalorder %s11, 0
    %p157 = por %p155, %p156
    %p158 = scmp.ne.s32.totalorder %s147, %s150
    %p159 = scmp.eq.s32.totalorder %s16, 1
    %p160 = por %p158, %p159
    %p161 = scmp.ne.s32.totalorder %s150, %s151
    %p162 = scmp.eq.s32.totalorder %s16, 0
    %p163 = por %p161, %p162
    %p164 = scmp.ne.s32.totalorder %s150, %s151
    %p165 = scmp.eq.s32.totalorder %s17, 1
    %p166 = por %p164, %p165
    %p168 = scmp.ne.s32.totalorder %s151, %s167
    %p169 = scmp.eq.s32.totalorder %s17, 0
    %p170 = por %p168, %p169
    %p171 = scmp.le.s32.totalorder 1, %s11
    %p172 = scmp.lt.s32.totalorder %s11, 3
    %p173 = pnand %p171, %p172
    %p174 = pneg %p173
    // Predicated region
    $region9: #{subsample_block_forward.1} parent=5 // pred_check
      _
    $region10: #{subsample_block_forward.1} parent=5 // pred_check_branch
      %176 = sbr.rel (%p173) target = $region12
    $region11: #{subsample_block_forward.1} parent=5 // pred_region
      %s177 = ssub.s32 %s11, 1
      // Predicated region
      $region13: #{subsample_block_forward.1} parent=11 // pred_check
        %p178 = pneg %p72
      $region14: #{subsample_block_forward.1} parent=11 // pred_check_branch
        %180 = sbr.rel (%p178) target = $region16
      $region15: #{subsample_block_forward.1} parent=11 // pred_region
        _
      $region16: #{subsample_block_forward.1} parent=11 // pred_fallthru
        _
      // Predicated region
      $region17: #{subsample_block_forward.1} parent=11 // pred_check
        %p181 = pneg %p93
      $region18: #{subsample_block_forward.1} parent=11 // pred_check_branch
        %183 = sbr.rel (%p181) target = $region20
      $region19: #{subsample_block_forward.1} parent=11 // pred_region
        _
      $region20: #{subsample_block_forward.1} parent=11 // pred_fallthru
        _
      // Predicated region
      $region21: #{subsample_block_forward.1} parent=11 // pred_check
        %p184 = pneg %p114
      $region22: #{subsample_block_forward.1} parent=11 // pred_check_branch
        %186 = sbr.rel (%p184) target = $region24
      $region23: #{subsample_block_forward.1} parent=11 // pred_region
        _
      $region24: #{subsample_block_forward.1} parent=11 // pred_fallthru
        _
      // Predicated region
      $region25: #{subsample_block_forward.1} parent=11 // pred_check
        %p187 = pneg %p135
      $region26: #{subsample_block_forward.1} parent=11 // pred_check_branch
        %189 = sbr.rel (%p187) target = $region28
      $region27: #{subsample_block_forward.1} parent=11 // pred_region
        _
      $region28: #{subsample_block_forward.1} parent=11 // pred_fallthru
        _
    $region12: #{subsample_block_forward.1} parent=5 // pred_fallthru
      _
    %p190 = scmp.lt.s32.totalorder %s11, 2
    // Predicated region
    $region29: #{subsample_block_forward.1} parent=5 // pred_check
      %p191 = pneg %p190
    $region30: #{subsample_block_forward.1} parent=5 // pred_check_branch
      %193 = sbr.rel (%p191) target = $region32
    $region31: #{subsample_block_forward.1} parent=5 // pred_region
      // Predicated region
      $region33: #{subsample_block_forward.1} parent=31 // pred_check
        %p194 = pneg %p45
      $region34: #{subsample_block_forward.1} parent=31 // pred_check_branch
        %196 = sbr.rel (%p194) target = $region36
      $region35: #{subsample_block_forward.1} parent=31 // pred_region
        %p197 = scmp.lt.s32.totalorder %s18, 1
        %s198 = scalar_select %p197, %s18, 1
        %p199 = scmp.lt.s32.totalorder %s19, 0
        %s200 = scalar_select %p199, %s19, 0
        %s201 = smul.addr %s200, 8
        %s202 = smul.addr %s198, 16
        %s203 = sadd.s32 %s201, %s202
        %s204 = smul.addr %s203, 4
        %s205 = scalar_lea.vmem %s0, %s204
      $region36: #{subsample_block_forward.1} parent=31 // pred_fallthru
        _
    $region32: #{subsample_block_forward.1} parent=5 // pred_fallthru
      _
    %p206 = scmp.le.s32.totalorder 1, %s11
    %p207 = scmp.lt.s32.totalorder %s11, 3
    %p208 = pnand %p206, %p207
    %p209 = pneg %p208
    // Predicated region
    $region37: #{subsample_block_forward.1} parent=5 // pred_check
      _
    $region38: #{subsample_block_forward.1} parent=5 // pred_check_branch
      %211 = sbr.rel (%p208) target = $region40
    $region39: #{subsample_block_forward.1} parent=5 // pred_region
      %s212 = ssub.s32 %s11, 1
      %p213 = scmp.lt.s32.totalorder %s20, 1
      %s214 = scalar_select %p213, %s20, 1
      %p215 = scmp.lt.s32.totalorder %s21, 0
      %s216 = scalar_select %p215, %s21, 0
      %s217 = smul.addr %s216, 8
      %s218 = smul.addr %s214, 16
      %s219 = sadd.s32 %s217, %s218
      %s220 = smul.addr %s219, 4
      %s221 = scalar_lea.vmem %s0, %s220
      %p222 = pneg %p51
      %p223 = pneg %p48
      %p224 = pneg %p72
      %p225 = pneg %p69
      %p226 = pneg %p93
      %p227 = pneg %p90
      %p228 = pneg %p114
      %p229 = pneg %p111
      %p230 = pneg %p135
      %p231 = pneg %p132
      %p232 = pneg %p163
      %p233 = pneg %p160
      %p234 = scmp.lt.s32.totalorder %s20, 1
      %s235 = scalar_select %p234, %s20, 1
      %p236 = scmp.lt.s32.totalorder %s21, 0
      %s237 = scalar_select %p236, %s21, 0
      %s238 = smul.addr %s235, 4
      %s239 = sadd.s32 %s237, %s238
      %s240 = smul.addr %s239, 8
      %s241 = scalar_lea.vmem %s5, %s240
      %p242 = scmp.lt.s32.totalorder %s20, 1
      %s243 = scalar_select %p242, %s20, 1
      %p244 = scmp.lt.s32.totalorder %s21, 0
      %s245 = scalar_select %p244, %s21, 0
      %s246 = smul.addr %s245, 8
      %s247 = smul.addr %s243, 16
      %s248 = sadd.s32 %s246, %s247
      %s249 = smul.addr %s248, 4
      %s250 = scalar_lea.vmem %s0, %s249
      %p251 = scmp.lt.s32.totalorder %s20, 1
      %s252 = scalar_select %p251, %s20, 1
      %p253 = scmp.lt.s32.totalorder %s21, 0
      %s254 = scalar_select %p253, %s21, 0
      %s255 = smul.addr %s252, 4
      %s256 = sadd.s32 %s254, %s255
      %s257 = smul.addr %s256, 8
      %s258 = scalar_lea.vmem %s5, %s257
      %v260 = vld [vmem:[%s250] sm:$0xf]
      %v261 = vld [vmem:[%s250 + $0x8] sm:$0xf]
      %v262 = vld [vmem:[%s250 + $0x10] sm:$0xf]
      %v263 = vld [vmem:[%s250 + $0x18] sm:$0xf]
      %s264 = scalar_lea.vmem %s250, 32
      %v265 = vld [vmem:[%s264] sm:$0xf]
      %v266 = vld [vmem:[%s264 + $0x8] sm:$0xf]
      %v267 = vld [vmem:[%s264 + $0x10] sm:$0xf]
      %v268 = vld [vmem:[%s264 + $0x18] sm:$0xf]
      %v269 = vld [vmem:[%s250] sm:$0xff]
      %v270 = vld [vmem:[%s250 + $0x8] sm:$0xff]
      %v271 = vld [vmem:[%s250 + $0x10] sm:$0xff]
      %v272 = vld [vmem:[%s250 + $0x18] sm:$0xff]
      %v277 = vunpack.c.l.b16 %v260
      %v278 = vunpack.c.l.b16 %v261
      %v279 = vunpack.c.l.b16 %v262
      %v280 = vunpack.c.l.b16 %v263
      %v281 = vpack.c.b16 %v278, %v277
      %v282 = vpack.c.b16 %v280, %v279
      %v289 = vunpack.c.l.b16 %v265
      %v290 = vunpack.c.l.b16 %v266
      %v291 = vunpack.c.l.b16 %v267
      %v292 = vunpack.c.l.b16 %v268
      %v293 = vpack.c.b16 %v290, %v289
      %v294 = vpack.c.b16 %v292, %v291
      %v301 = vunpack.c.l.b16 %v269
      %v302 = vunpack.c.h.b16 %v269
      %v303 = vunpack.c.l.b16 %v270
      %v304 = vunpack.c.h.b16 %v270
      %v305 = vunpack.c.l.b16 %v271
      %v306 = vunpack.c.h.b16 %v271
      %v307 = vunpack.c.l.b16 %v272
      %v308 = vunpack.c.h.b16 %v272
      %v309 = vpack.c.b16 %v303, %v301
      %v310 = vpack.c.b16 %v304, %v302
      %v311 = vpack.c.b16 %v307, %v305
      %v312 = vpack.c.b16 %v308, %v306
      %313 = vrot.lane.b32.xlu0 %v309, 127
      %v314 = vpop.permute.xlu0 %313
      %315 = vrot.lane.b32.xlu0 %v310, 127
      %v316 = vpop.permute.xlu0 %315
      %317 = vrot.lane.b32.xlu0 %v311, 127
      %v318 = vpop.permute.xlu0 %317
      %319 = vrot.lane.b32.xlu0 %v312, 127
      %v320 = vpop.permute.xlu0 %319
      %vm321 = vcmask 1039360
      %v322 = vsel %vm321, %v314, %v316
      %v323 = vsel %vm321, %v318, %v320
      %v326 = vld [vmem:[%s1] sm:$0xf]
      %v327 = vld [vmem:[%s1 + $0x4] sm:$0xf]
      %v328 = vld [vmem:[%s1 + $0x8] sm:$0xf]
      %v329 = vld [vmem:[%s1 + $0xc] sm:$0xf]
      %v330 = vld [vmem:[%s2] sm:$0xff]
      %v331 = vld [vmem:[%s2 + $0x8] sm:$0xff]
      %v332 = vld [vmem:[%s2 + $0x10] sm:$0xff]
      %v333 = vld [vmem:[%s2 + $0x18] sm:$0xff]
      %335 = vset.pattern.permute.xlu0 0
      %336 = vperm.xlu0 %335, %v330
      %v337 = vpop.permute.xlu0 %336
      %340 = vset.pattern.permute.xlu0 0
      %341 = vperm.xlu0 %340, %v331
      %v342 = vpop.permute.xlu0 %341
      %345 = vset.pattern.permute.xlu0 0
      %346 = vperm.xlu0 %345, %v332
      %v347 = vpop.permute.xlu0 %346
      %350 = vset.pattern.permute.xlu0 0
      %351 = vperm.xlu0 %350, %v333
      %v352 = vpop.permute.xlu0 %351
      %v358 = vunpack.c.l.b16 %v326
      %v359 = vunpack.c.l.b16 %v327
      %v360 = vunpack.c.l.b16 %v328
      %v361 = vunpack.c.l.b16 %v329
      %v362 = vpack.c.b16 %v359, %v358
      %v363 = vpack.c.b16 %v361, %v360
      %vm364 = vcmask 785408
      %v366 = vsel %vm364, %v362, 0
      %v369 = vsel %vm364, %v363, 0
      %371 = vmatprep.subr.bf16.mxu0 0
      %372 = vmatpush1.bf16.msra.mxu0 %v281
      %373 = vmatprep.subr.bf16.mxu0 0
      %374 = vmatpush1.bf16.msra.mxu0 %v282
      %375 = vmatprep.subr.bf16.mxu0 0
      %376 = vmatpush1.bf16.msra.mxu0 %v293
      %377 = vmatprep.subr.bf16.mxu0 0
      %378 = vmatpush1.bf16.msra.mxu0 %v294
      %379 = vmatprep.subr.bf16.mxu0 0
      %380 = vmatpush1.bf16.msra.mxu0 %v322
      %381 = vmatprep.subr.bf16.mxu0 0
      %382 = vmatpush1.bf16.msra.mxu0 %v323
      %383 = vmatprep.subr.bf16.mxu0 0
      %384 = vmatpush1.bf16.msra.mxu0 0
      %385 = vmatprep.subr.bf16.mxu0 0
      %386 = vmatpush1.bf16.msra.mxu0 0
      %387 = vmatprep.subr.bf16.mxu0 0
      %388 = vmatpush1.bf16.msra.mxu0 0
      %389 = vmatprep.subr.bf16.mxu0 0
      %390 = vmatpush1.bf16.msra.mxu0 0
      %391 = vmatprep.subr.bf16.mxu0 0
      %392 = vmatpush1.bf16.msra.mxu0 0
      %393 = vmatprep.subr.bf16.mxu0 0
      %394 = vmatpush1.bf16.msra.mxu0 0
      %395 = vmatprep.subr.bf16.mxu0 0
      %396 = vmatpush1.bf16.msra.mxu0 0
      %397 = vmatprep.subr.bf16.mxu0 0
      %398 = vmatpush1.bf16.msra.mxu0 0
      %399 = vmatprep.subr.bf16.mxu0 0
      %400 = vmatpush1.bf16.msra.mxu0 0
      %401 = vmatprep.subr.bf16.mxu0 0
      %402 = vmatpush1.bf16.msra.mxu0 0
      %403 = vmatprep.mubr.bf16.mxu0 0
      %404 = vmatmul.mubr.bf16.gmra.mrb[0].mxu0 %v366
      %v405 = vpop.f32.mrb[0].mxu0
      %v406 = vadd.f32 %v337, %v405
      %v407 = vpop.f32.mrb[0].mxu0
      %v408 = vpop.f32.mrb[0].mxu0
      %v409 = vadd.f32 %v342, %v408
      %v410 = vpop.f32.mrb[0].mxu0
      %411 = vmatprep.mubr.bf16.mxu0 0
      %412 = vmatmul.mubr.bf16.gmra.mrb[0].mxu0 %v369
      %v413 = vpop.f32.mrb[0].mxu0
      %v414 = vadd.f32 %v347, %v413
      %v415 = vpop.f32.mrb[0].mxu0
      %v416 = vpop.f32.mrb[0].mxu0
      %v417 = vadd.f32 %v352, %v416
      %v418 = vpop.f32.mrb[0].mxu0
      %419 = vdwg.mxu0
      %v420 = vmax.f32 %v406, 0.0
      %v421 = vmax.f32 %v409, 0.0
      %v422 = vmax.f32 %v414, 0.0
      %v423 = vmax.f32 %v417, 0.0
      %v424 = vadd.f32 %v420, %v421
      %v425 = vadd.f32 %v424, %v422
      %v426 = vadd.f32 %v425, %v423
      %v427 = vrot.slane %v426, 4
      %v428 = vadd.f32 %v426, %v427
      %v429 = vrot.slane %v428, 2
      %v430 = vadd.f32 %v428, %v429
      %v431 = vrot.slane %v430, 1
      %v432 = vadd.f32 %v430, %v431
      %v433 = vrcp.pop 32.0
      %v434 = vmul.f32 %v432, %v433
      %v435 = vsub.f32 %v420, %v434
      %v436 = vsub.f32 %v421, %v434
      %v437 = vsub.f32 %v422, %v434
      %v438 = vsub.f32 %v423, %v434
      %v439 = vmul.f32 %v435, %v435
      %v440 = vmul.f32 %v436, %v436
      %v441 = vmul.f32 %v437, %v437
      %v442 = vmul.f32 %v438, %v438
      %v443 = vadd.f32 %v439, %v440
      %v444 = vadd.f32 %v443, %v441
      %v445 = vadd.f32 %v444, %v442
      %v446 = vrot.slane %v445, 4
      %v447 = vadd.f32 %v445, %v446
      %v448 = vrot.slane %v447, 2
      %v449 = vadd.f32 %v447, %v448
      %v450 = vrot.slane %v449, 1
      %v451 = vadd.f32 %v449, %v450
      %v452 = vmul.f32 %v451, %v433
      %v453 = vadd.f32 %v452, 1e-12
      %v454 = vrsqrt.pop %v453
      %v455 = vmul.f32 %v435, %v454
      %v456 = vmul.f32 %v436, %v454
      %v457 = vmul.f32 %v437, %v454
      %v458 = vmul.f32 %v438, %v454
      %v459 = vld [vmem:[%s3] sm:$0xff]
      %v460 = vld [vmem:[%s3 + $0x8] sm:$0xff]
      %v461 = vld [vmem:[%s3 + $0x10] sm:$0xff]
      %v462 = vld [vmem:[%s3 + $0x18] sm:$0xff]
      %464 = vset.pattern.permute.xlu0 0
      %465 = vperm.xlu0 %464, %v459
      %v466 = vpop.permute.xlu0 %465
      %469 = vset.pattern.permute.xlu0 0
      %470 = vperm.xlu0 %469, %v460
      %v471 = vpop.permute.xlu0 %470
      %474 = vset.pattern.permute.xlu0 0
      %475 = vperm.xlu0 %474, %v461
      %v476 = vpop.permute.xlu0 %475
      %479 = vset.pattern.permute.xlu0 0
      %480 = vperm.xlu0 %479, %v462
      %v481 = vpop.permute.xlu0 %480
      %v483 = vmul.f32 %v455, %v466
      %v484 = vmul.f32 %v456, %v471
      %v485 = vmul.f32 %v457, %v476
      %v486 = vmul.f32 %v458, %v481
      %v487 = vld [vmem:[%s4] sm:$0xff]
      %v488 = vld [vmem:[%s4 + $0x8] sm:$0xff]
      %v489 = vld [vmem:[%s4 + $0x10] sm:$0xff]
      %v490 = vld [vmem:[%s4 + $0x18] sm:$0xff]
      %492 = vset.pattern.permute.xlu0 0
      %493 = vperm.xlu0 %492, %v487
      %v494 = vpop.permute.xlu0 %493
      %497 = vset.pattern.permute.xlu0 0
      %498 = vperm.xlu0 %497, %v488
      %v499 = vpop.permute.xlu0 %498
      %502 = vset.pattern.permute.xlu0 0
      %503 = vperm.xlu0 %502, %v489
      %v504 = vpop.permute.xlu0 %503
      %507 = vset.pattern.permute.xlu0 0
      %508 = vperm.xlu0 %507, %v490
      %v509 = vpop.permute.xlu0 %508
      %v511 = vadd.f32 %v483, %v494
      %v512 = vadd.f32 %v484, %v499
      %v513 = vadd.f32 %v485, %v504
      %v514 = vadd.f32 %v486, %v509
      %515 = vst [vmem:[%s258] sm:$0xff] %v511
      %516 = vst [vmem:[%s258 + $0x8] sm:$0xff] %v512
      %517 = vst [vmem:[%s258 + $0x10] sm:$0xff] %v513
      %518 = vst [vmem:[%s258 + $0x18] sm:$0xff] %v514
      %p519 = scmp.lt.s32.totalorder %s20, 1
      %s520 = scalar_select %p519, %s20, 1
      %p521 = scmp.lt.s32.totalorder %s21, 0
      %s522 = scalar_select %p521, %s21, 0
      %s523 = smul.addr %s520, 4
      %s524 = sadd.s32 %s522, %s523
      %s525 = smul.addr %s524, 8
      %s526 = scalar_lea.vmem %s5, %s525
      // Predicated region
      $region41: #{subsample_block_forward.1} parent=39 // pred_check
        %p527 = pneg %p160
      $region42: #{subsample_block_forward.1} parent=39 // pred_check_branch
        %529 = sbr.rel (%p527) target = $region44
      $region43: #{subsample_block_forward.1} parent=39 // pred_region
        _
      $region44: #{subsample_block_forward.1} parent=39 // pred_fallthru
        _
    $region40: #{subsample_block_forward.1} parent=5 // pred_fallthru
      _
    %p530 = scmp.le.s32.totalorder 2, %s11
    // Predicated region
    $region45: #{subsample_block_forward.1} parent=5 // pred_check
      %p531 = pneg %p530
    $region46: #{subsample_block_forward.1} parent=5 // pred_check_branch
      %533 = sbr.rel (%p531) target = $region48
    $region47: #{subsample_block_forward.1} parent=5 // pred_region
      %s534 = ssub.s32 %s11, 2
      // Predicated region
      $region49: #{subsample_block_forward.1} parent=47 // pred_check
        %p535 = pneg %p166
      $region50: #{subsample_block_forward.1} parent=47 // pred_check_branch
        %537 = sbr.rel (%p535) target = $region52
      $region51: #{subsample_block_forward.1} parent=47 // pred_region
        %p538 = scmp.lt.s32.totalorder %s22, 1
        %s539 = scalar_select %p538, %s22, 1
        %p540 = scmp.lt.s32.totalorder %s23, 0
        %s541 = scalar_select %p540, %s23, 0
        %s542 = smul.addr %s539, 4
        %s543 = sadd.s32 %s541, %s542
        %s544 = smul.addr %s543, 8
        %s545 = scalar_lea.vmem %s5, %s544
      $region52: #{subsample_block_forward.1} parent=47 // pred_fallthru
        _
    $region48: #{subsample_block_forward.1} parent=5 // pred_fallthru
      _
  $region6: #{subsample_block_forward.1} parent=0 // loop_footer
    %s15 = sadd.s32 1, %s11
  $region7: #{subsample_block_forward.1} parent=0 // loop_footer_branch
    %10 = sbr.rel target = $region3
  $region8: #{subsample_block_forward.1} parent=0 // loop_exit
    _

</llo_original>
